<compile_context>
chip_gen: v7x
topology: tpu7x:2x2x1
jax: 0.10.0
libtpu: 0.0.40
codegen_flags: <defaults>
</compile_context>

<pallas_src>
import math

import jax
import jax.numpy as jnp
from jax.experimental import pallas as pl
from jax.experimental.pallas import tpu as pltpu


def _zeroone_ref(x: jnp.ndarray) -> jnp.ndarray:
    """Plain-JAX ZeroOneAct forward: sign(x).clamp(min=0), NaN-propagating."""
    y = (x > 0).astype(x.dtype)
    if jnp.issubdtype(x.dtype, jnp.floating):
        y = jnp.where(jnp.isnan(x), x, y)
    return y


def _zeroone_kernel(x_ref, o_ref):
    # Elementwise, VPU-only: 1 where x > 0, else 0; NaN passes through.
    x = x_ref[...]
    y = (x > 0).astype(o_ref.dtype)
    if jnp.issubdtype(o_ref.dtype, jnp.floating):
        # Match torch: sign(NaN).clamp_(min=0) propagates NaN.
        y = jnp.where(jnp.isnan(x), x, y)
    o_ref[...] = y


def _default_block_bytes() -> int:
    # ~2 MiB blocks already reach ~86% of HBM roofline on v5e/v6e; v7x's
    # ~3.2 TB/s/TC makes the ~0.35us per-step overhead relatively larger, so
    # use ~4 MiB there (16 MiB double-buffered in+out, well under 64 MiB VMEM).
    try:
        kind = jax.devices()[0].device_kind.lower()
    except Exception:  # pragma: no cover - defensive
        kind = ""
    return (4 << 20) if "7" in kind else (2 << 20)


def zeroone_act(x: jnp.ndarray, *, block_bytes: int | None = None,
                min_kernel_bytes: int = 256 * 1024) -> jnp.ndarray:
    """ZeroOneAct forward via a lane-dense, row-tiled Pallas TPU kernel.

    Small inputs (or sizes not divisible by 128 lanes) use plain JAX so XLA
    can fuse them.  Everything else streams through a double-buffered
    (rows, lanes) pipeline with no padding and no extra HBM copies.
    """
    orig_shape = x.shape
    dtype = x.dtype
    n = math.prod(orig_shape) if orig_shape else 1
    itemsize = jnp.dtype(dtype).itemsize
    total_bytes = n * itemsize

    # Fast path: tiny tensors, empty tensors, or ragged (n % 128 != 0) sizes.
    if total_bytes < min_kernel_bytes or n == 0 or n % 128 != 0:
        return _zeroone_ref(x)

    # Lane width: widest of {512, 256, 128} that divides n (always succeeds
    # here since n % 128 == 0).  Keeps stores fully lane-dense (unmasked vst).
    lanes = 128
    for cand in (512, 256):
        if n % cand == 0:
            lanes = cand
            break

    # Sublane granularity by dtype packing (f32: 8, bf16: 16, int8/fp8: 32).
    sublane = {4: 8, 2: 16, 1: 32}.get(itemsize, 8)

    rows = n // lanes

    # Rows per block, sized by BYTES so every dtype gets ~block_bytes tiles.
    if block_bytes is None:
        block_bytes = _default_block_bytes()
    tr = max(sublane, (block_bytes // (lanes * itemsize)) // sublane * sublane)
    # Guarantee >= 2 grid steps when the input allows it (v7x 2-TC sharding;
    # harmless on single-TC v5e/v6e).
    if rows >= 2 * sublane:
        half = -(-rows // 2)
        tr = min(tr, max(sublane, (half // sublane) * sublane))
    if tr >= rows:
        tr = rows  # single full-extent block (only for very small row counts)

    grid = (pl.cdiv(rows, tr),)

    # Only raise the scoped-VMEM limit when blocks exceed the 2 MiB baseline
    # (4x block_bytes is needed for double-buffered input + output).
    vmem_limit = (48 << 20) if block_bytes > (2 << 20) else None

    x2d = x.reshape(rows, lanes)  # metadata-only for contiguous inputs

    out2d = pl.pallas_call(
        _zeroone_kernel,
        out_shape=jax.ShapeDtypeStruct((rows, lanes), dtype),
        grid=grid,
        in_specs=[pl.BlockSpec((tr, lanes), lambda i: (i, 0))],
        out_specs=pl.BlockSpec((tr, lanes), lambda i: (i, 0)),
        compiler_params=pltpu.CompilerParams(
            dimension_semantics=("parallel",),
            vmem_limit_bytes=vmem_limit,
        ),
        cost_estimate=pl.CostEstimate(
            flops=n, transcendentals=0, bytes_accessed=2 * n * itemsize),
    )(x2d)

    return out2d.reshape(orig_shape)


if __name__ == "__main__":
    key = jax.random.PRNGKey(0)
    # NCHW input, small shape: batch=2, channels=4, spatial=16x16.
    x = jax.random.normal(key, (2, 4, 16, 16), dtype=jnp.float32)
    ref = _zeroone_ref(x)

    # Force the Pallas kernel path even for this small example.
    y = zeroone_act(x, min_kernel_bytes=0)
    y = jax.block_until_ready(y)
    assert y.shape == x.shape and y.dtype == x.dtype
    assert bool(jnp.all(y == ref)), "mismatch vs reference (forced kernel path)"

    # Default path for the small input (plain-JAX fast path).
    y_fast = jax.block_until_ready(zeroone_act(x))
    assert bool(jnp.all(y_fast == ref)), "mismatch vs reference (fast path)"

    # A larger bf16 tensor that exercises the default kernel path (>=2 steps).
    x_big = jax.random.normal(jax.random.PRNGKey(1), (8, 32, 64, 64)).astype(jnp.bfloat16)
    y_big = jax.block_until_ready(zeroone_act(x_big))
    ref_big = _zeroone_ref(x_big)
    assert y_big.shape == x_big.shape and y_big.dtype == x_big.dtype
    assert bool(jnp.all(y_big == ref_big)), "mismatch vs reference (big input)"

    print("KERNEL_OK")
</pallas_src>

<mosaic_0001>
module attributes {stable_mosaic.version = 11 : i64} {
  func.func @_zeroone_kernel(%arg0: i32, %arg1: memref<4x512xf32, #tpu.memory_space<vmem>>, %arg2: memref<4x512xf32, #tpu.memory_space<vmem>>) attributes {dimension_semantics = [#tpu.dimension_semantics<parallel>], iteration_bounds = array<i64: 1>, scalar_prefetch = 0 : i64, scratch_operands = 0 : i64, tpu.core_type = #tpu.core_type<tc>, window_params = [{transform_indices = @transform_0, window_bounds = array<i64: 4, 512>}, {transform_indices = @transform_1, window_bounds = array<i64: 4, 512>}]} {
    %c0 = arith.constant 0 : index
    %c0_0 = arith.constant 0 : index
    %0 = vector.load %arg1[%c0, %c0_0] : memref<4x512xf32, #tpu.memory_space<vmem>>, vector<4x512xf32>
    %cst = arith.constant 0.000000e+00 : f32
    %1 = vector.broadcast %cst : f32 to vector<4x512xf32>
    %2 = arith.cmpf ogt, %0, %1 : vector<4x512xf32>
    %3 = arith.extui %2 : vector<4x512xi1> to vector<4x512xi32>
    %4 = arith.sitofp %3 : vector<4x512xi32> to vector<4x512xf32>
    %5 = arith.cmpf one, %0, %0 : vector<4x512xf32>
    %6 = arith.select %5, %0, %4 : vector<4x512xi1>, vector<4x512xf32>
    %c0_1 = arith.constant 0 : index
    %c0_2 = arith.constant 0 : index
    %7 = vector.load %arg2[%c0_1, %c0_2] : memref<4x512xf32, #tpu.memory_space<vmem>>, vector<4x512xf32>
    tpu.vector_store %arg2[%c0_1, %c0_2], %6 {strides = array<i32>} : memref<4x512xf32, #tpu.memory_space<vmem>>, vector<4x512xf32>,
    return
  }
  func.func @transform_0(%arg0: i32) -> (i32, i32) {
    %c0_i32 = arith.constant 0 : i32
    %c0_i32_0 = arith.constant 0 : i32
    return %arg0, %c0_i32 : i32, i32
  }
  func.func @transform_1(%arg0: i32) -> (i32, i32) {
    %c0_i32 = arith.constant 0 : i32
    %c0_i32_0 = arith.constant 0 : i32
    return %arg0, %c0_i32 : i32, i32
  }
}

</mosaic_0001>

<llo_original>
// kernel: tpu_custom_call.1
$region0: #{tpu_custom_call.1}
  #allocation0 [shape = 'u32[]', space=smem, size = 0x4, offset = 0x4, fixed_abs, tag = 'smem constant byte address 0x4 - core index']
  #allocation1 [shape = 'u32[144,128]{1,0:T(1,128)}', space=vmem, size = 0x12000, scoped, tag = 'internal scratch']
  %s0 = inlined_call_operand.hbm [shape: f32[4,512], index: 0, kind: input, shape index: {}]
  %s1 = inlined_call_operand.hbm [shape: f32[4,512], index: 1, kind: output, shape index: {}]
  %s2 = sld [smem:[#allocation0]]
  $region18: #{tpu_custom_call.1} parent=0
    _
  %s4 = ssub.s32 1, %s2
  %s5 = scalar_select 0, %s4, %s2
  $region1: #{tpu_custom_call.1} parent=0
    #allocation2 [shape = 'u8[8192]{0}', space=vmem, size = 0x2000, scoped, tag = 'input window, operand 0, single buffered']
    #allocation3 [shape = 's32[1]{0}', space=sflag, size = 0x4, scoped, tag = 'scoped memory for tpu_custom_call.1']
    #allocation4 [shape = 's32[1]{0}', space=sflag, size = 0x4, scoped, tag = 'scoped memory for tpu_custom_call.1']
    #allocation5 [shape = 'u8[8192]{0}', space=vmem, size = 0x2000, scoped, tag = 'output window, operand 0, single buffered']
    %6 = vsyncpa [#allocation3], 0
    %7 = vsyncpa [#allocation4], 0
    // Predicated region
    $region2: #{tpu_custom_call.1} parent=1 // pred_check
      _
    $region3: #{tpu_custom_call.1} parent=1 // pred_check_branch
      %9 = sbr.rel (0) target = $region5
    $region4: #{tpu_custom_call.1} parent=1 // pred_region
      %s11 = ssub.s32 256, 256
      %12 = vsyncadd [#allocation3], %s11
      %s14 = sshll.u32 [#allocation2], 4
      %s15 = int_to_ptr.vmem [resolvable:$true] %s14
      %17 = dma.hbm_to_vmem [thread:$0]  %s0, 256, %s15, [#allocation3]
    $region5: #{tpu_custom_call.1} parent=1 // pred_fallthru
      _
    // Predicated region
    $region6: #{tpu_custom_call.1} parent=1 // pred_check
      _
    $region7: #{tpu_custom_call.1} parent=1 // pred_check_branch
      %19 = sbr.rel (0) target = $region9
    $region8: #{tpu_custom_call.1} parent=1 // pred_region
      %20 = dma.done [#allocation3], 256
    $region9: #{tpu_custom_call.1} parent=1 // pred_fallthru
      _
    %v21 = vld [vmem:[#allocation2] sm:$0xff]
    %v22 = vld [vmem:[#allocation2 + $0x8] sm:$0xff]
    %vm23 = vcmp.gt.f32.partialorder %v21, 0.0
    %vm24 = vcmp.gt.f32.partialorder %v22, 0.0
    %v25 = vsel %vm23, 1, 0
    %v26 = vsel %vm24, 1, 0
    %v27 = vcvt.s32.f32 %v25
    %v28 = vcvt.s32.f32 %v26
    %vm29 = vcmp.ne.f32.partialorder %v21, %v21
    %vm30 = vcmp.ne.f32.partialorder %v22, %v22
    %v31 = vsel %vm29, %v21, %v27
    %v32 = vsel %vm30, %v22, %v28
    %33 = vst [vmem:[#allocation5] sm:$0xff] %v31
    %34 = vst [vmem:[#allocation5 + $0x8] sm:$0xff] %v32
    // Predicated region
    $region10: #{tpu_custom_call.1} parent=1 // pred_check
      _
    $region11: #{tpu_custom_call.1} parent=1 // pred_check_branch
      %36 = sbr.rel (0) target = $region13
    $region12: #{tpu_custom_call.1} parent=1 // pred_region
      %s38 = ssub.s32 256, 256
      %39 = vsyncadd [#allocation4], %s38
      %s41 = sshll.u32 [#allocation5], 4
      %s42 = int_to_ptr.vmem [resolvable:$true] %s41
      %44 = dma.vmem_to_hbm [thread:$0]  %s42, 256, %s1, [#allocation4]
    $region13: #{tpu_custom_call.1} parent=1 // pred_fallthru
      _
    // Predicated region
    $region14: #{tpu_custom_call.1} parent=1 // pred_check
      _
    $region15: #{tpu_custom_call.1} parent=1 // pred_check_branch
      %46 = sbr.rel (0) target = $region17
    $region16: #{tpu_custom_call.1} parent=1 // pred_region
      %47 = dma.done [#allocation4], 256
    $region17: #{tpu_custom_call.1} parent=1 // pred_fallthru
      _
    %48 = vsyncpa [#allocation3], 1
    %49 = vsyncpa [#allocation4], 1

</llo_original>
